<compile_context>
chip_gen: v5e
topology: v5e:2x2
jax: 0.10.0
libtpu: 0.0.40
codegen_flags: <defaults>
</compile_context>

<pallas_src>
import jax
import jax.numpy as jnp
from jax.experimental import pallas as pl
from jax.experimental.pallas import tpu as pltpu


def _ffn_kernel(x_ref, w1_ref, b1_ref, w2_ref, b2_ref, o_ref, acc_ref):
    # x_ref:  (tm, D)      input rows
    # w1_ref: (D, th)      ffn1 weight tile (pre-transposed)
    # b1_ref: (1, th)      ffn1 bias tile
    # w2_ref: (th, D)      ffn2 weight tile (pre-transposed)
    # b2_ref: (1, D)       ffn2 bias
    # o_ref:  (tm, D)      output rows (resident across hidden tiles)
    # acc_ref:(tm, D) f32  accumulator scratch
    j = pl.program_id(1)

    @pl.when(j == 0)
    def _init():
        acc_ref[...] = jnp.zeros_like(acc_ref)

    # ffn1 for this hidden tile: (tm, D) @ (D, th) -> (tm, th), fused bias+Swish.
    h = jnp.dot(x_ref[...], w1_ref[...], preferred_element_type=jnp.float32)
    h = h + b1_ref[...].astype(jnp.float32)
    h = h * (1.0 / (1.0 + jnp.exp(-h)))          # Swish / SiLU

    # ffn2 partial sum over this hidden tile: (tm, th) @ (th, D) -> (tm, D).
    acc_ref[...] += jnp.dot(
        h.astype(w2_ref.dtype), w2_ref[...], preferred_element_type=jnp.float32
    )

    @pl.when(j == pl.num_programs(1) - 1)
    def _finalize():
        o_ref[...] = (acc_ref[...] + b2_ref[...].astype(jnp.float32)).astype(
            o_ref.dtype
        )


def _pick_tile(total, target, quantum):
    """Largest tile <= target that is a multiple of `quantum` and divides `total`
    (falls back to the full dimension, which is always legal)."""
    if total <= target:
        return total
    t = (target // quantum) * quantum
    while t >= quantum:
        if total % t == 0:
            return t
        t -= quantum
    return total


def feed_forward_module(x, w1, b1, w2, b2, *, block_m=None, block_h=None):
    """Forward pass of FeedForwardModule (inference; dropout = identity).

    Args:
      x:  (B, T, D)  inputs
      w1: (H, D), b1: (H,)   -- PyTorch nn.Linear ffn1 (H = D * expansion_factor)
      w2: (D, H), b2: (D,)   -- PyTorch nn.Linear ffn2
    Returns:
      (B, T, D)
    """
    b, t, d = x.shape
    h_dim, d_in = w1.shape
    assert d_in == d and w2.shape == (d, h_dim)
    assert b1.shape == (h_dim,) and b2.shape == (d,)

    m = b * t
    x2 = x.reshape(m, d)
    # One-time layout plumbing on the wrapper side (weights would normally be
    # stored pre-transposed); keeps the kernel's matmuls in natural (M,K)@(K,N).
    w1t = jnp.transpose(w1)          # (D, H)
    w2t = jnp.transpose(w2)          # (H, D)
    b1r = b1.reshape(1, h_dim)
    b2r = b2.reshape(1, d)

    if block_m is None:
        block_m = _pick_tile(m, 256, 8)
    if block_h is None:
        block_h = _pick_tile(h_dim, 512, 128)
    assert m % block_m == 0 and h_dim % block_h == 0

    grid = (m // block_m, h_dim // block_h)   # reduction (hidden) axis last

    out = pl.pallas_call(
        _ffn_kernel,
        out_shape=jax.ShapeDtypeStruct((m, d), x.dtype),
        grid_spec=pltpu.PrefetchScalarGridSpec(
            num_scalar_prefetch=0,
            grid=grid,
            in_specs=[
                pl.BlockSpec((block_m, d), lambda i, j: (i, 0)),     # x rows
                pl.BlockSpec((d, block_h), lambda i, j: (0, j)),     # W1^T tile
                pl.BlockSpec((1, block_h), lambda i, j: (0, j)),     # b1 tile
                pl.BlockSpec((block_h, d), lambda i, j: (j, 0)),     # W2^T tile
                pl.BlockSpec((1, d), lambda i, j: (0, 0)),           # b2
            ],
            out_specs=pl.BlockSpec((block_m, d), lambda i, j: (i, 0)),
            scratch_shapes=[pltpu.VMEM((block_m, d), jnp.float32)],
        ),
        compiler_params=pltpu.CompilerParams(
            dimension_semantics=("parallel", "arbitrary"),
        ),
    )(x2, w1t, b1r, w2t, b2r)

    return out.reshape(b, t, d)


def _reference_ffn(x, w1, b1, w2, b2):
    h = jnp.einsum("btd,hd->bth", x, w1) + b1
    h = h * (1.0 / (1.0 + jnp.exp(-h)))
    return jnp.einsum("bth,dh->btd", h, w2) + b2


if __name__ == "__main__":
    # Small shapes consistent with the module's forward: (batch, time, dim).
    B, T, D = 2, 8, 32
    EXPANSION = 4
    H = D * EXPANSION                # 128

    key = jax.random.PRNGKey(0)
    kx, k1, kb1, k2, kb2 = jax.random.split(key, 5)
    x = jax.random.normal(kx, (B, T, D), dtype=jnp.float32)
    w1 = jax.random.normal(k1, (H, D), dtype=jnp.float32) / jnp.sqrt(D)
    b1 = jax.random.normal(kb1, (H,), dtype=jnp.float32) * 0.1
    w2 = jax.random.normal(k2, (D, H), dtype=jnp.float32) / jnp.sqrt(H)
    b2 = jax.random.normal(kb2, (D,), dtype=jnp.float32) * 0.1

    # block_m=8 exercises the row-tiling path (grid = (2, 1) at these shapes).
    out = feed_forward_module(x, w1, b1, w2, b2, block_m=8)
    out = jax.block_until_ready(out)

    ref = _reference_ffn(x, w1, b1, w2, b2)
    assert out.shape == ref.shape
    # Tolerance accounts for MXU reduced-precision f32 matmul passes.
    assert jnp.allclose(out, ref, atol=2e-2, rtol=2e-2), "mismatch vs reference"

    print("KERNEL_OK")
</pallas_src>

<mosaic_0001>
module attributes {stable_mosaic.version = 11 : i64} {
  func.func @_ffn_kernel(%arg0: i32, %arg1: i32, %arg2: memref<8x32xf32, #tpu.memory_space<vmem>>, %arg3: memref<32x128xf32, #tpu.memory_space<vmem>>, %arg4: memref<1x128xf32, #tpu.memory_space<vmem>>, %arg5: memref<128x32xf32, #tpu.memory_space<vmem>>, %arg6: memref<1x32xf32, #tpu.memory_space<vmem>>, %arg7: memref<8x32xf32, #tpu.memory_space<vmem>>, %arg8: memref<8x32xf32, #tpu.memory_space<vmem>>) attributes {dimension_semantics = [#tpu.dimension_semantics<parallel>, #tpu.dimension_semantics<arbitrary>], iteration_bounds = array<i64: 2, 1>, scalar_prefetch = 0 : i64, scratch_operands = 1 : i64, tpu.core_type = #tpu.core_type<tc>, window_params = [{transform_indices = @transform_0, window_bounds = array<i64: 8, 32>}, {transform_indices = @transform_1, window_bounds = array<i64: 32, 128>}, {transform_indices = @transform_2, window_bounds = array<i64: 1, 128>}, {transform_indices = @transform_3, window_bounds = array<i64: 128, 32>}, {pipeline_mode = #tpu.pipeline_mode<synchronous>, transform_indices = @transform_4, window_bounds = array<i64: 1, 32>}, {transform_indices = @transform_5, window_bounds = array<i64: 8, 32>}]} {
    %c0_i32 = arith.constant 0 : i32
    %0 = arith.cmpi eq, %arg1, %c0_i32 : i32
    %1 = arith.extui %0 : i1 to i32
    %c0_i32_0 = arith.constant 0 : i32
    %2 = arith.cmpi ne, %1, %c0_i32_0 : i32
    scf.if %2 {
      %cst_18 = arith.constant 0.000000e+00 : f32
      %25 = vector.broadcast %cst_18 : f32 to vector<8x32xf32>
      %c0_19 = arith.constant 0 : index
      %c0_20 = arith.constant 0 : index
      %26 = vector.load %arg8[%c0_19, %c0_20] : memref<8x32xf32, #tpu.memory_space<vmem>>, vector<8x32xf32>
      tpu.vector_store %arg8[%c0_19, %c0_20], %25 {strides = array<i32>} : memref<8x32xf32, #tpu.memory_space<vmem>>, vector<8x32xf32>,
    } else {
    }
    %c0 = arith.constant 0 : index
    %c0_1 = arith.constant 0 : index
    %3 = vector.load %arg2[%c0, %c0_1] : memref<8x32xf32, #tpu.memory_space<vmem>>, vector<8x32xf32>
    %c0_2 = arith.constant 0 : index
    %c0_3 = arith.constant 0 : index
    %4 = vector.load %arg3[%c0_2, %c0_3] : memref<32x128xf32, #tpu.memory_space<vmem>>, vector<32x128xf32>
    %cst = arith.constant dense<0.000000e+00> : vector<8x128xf32>
    %5 = tpu.matmul %3, %4, %cst {dimension_numbers = #tpu.dot_dimension_numbers<[1], [0], [0], [1], [0, 0, 1, 1], [], []>} : vector<8x32xf32>, vector<32x128xf32>, vector<8x128xf32> -> vector<8x128xf32>
    %c0_4 = arith.constant 0 : index
    %c0_5 = arith.constant 0 : index
    %6 = vector.load %arg4[%c0_4, %c0_5] : memref<1x128xf32, #tpu.memory_space<vmem>>, vector<1x128xf32>
    %7 = vector.broadcast %6 : vector<1x128xf32> to vector<8x128xf32>
    %8 = arith.addf %5, %7 : vector<8x128xf32>
    %cst_6 = arith.constant 0.000000e+00 : f32
    %9 = vector.broadcast %cst_6 : f32 to vector<8x128xf32>
    %10 = arith.subf %9, %8 : vector<8x128xf32>
    %11 = math.exp %10 : vector<8x128xf32>
    %cst_7 = arith.constant 1.000000e+00 : f32
    %12 = vector.broadcast %cst_7 : f32 to vector<8x128xf32>
    %13 = arith.addf %12, %11 : vector<8x128xf32>
    %cst_8 = arith.constant 1.000000e+00 : f32
    %14 = vector.broadcast %cst_8 : f32 to vector<8x128xf32>
    %15 = arith.divf %14, %13 : vector<8x128xf32>
    %16 = arith.mulf %8, %15 : vector<8x128xf32>
    %c0_9 = arith.constant 0 : index
    %c0_10 = arith.constant 0 : index
    %17 = vector.load %arg8[%c0_9, %c0_10] : memref<8x32xf32, #tpu.memory_space<vmem>>, vector<8x32xf32>
    %c0_11 = arith.constant 0 : index
    %c0_12 = arith.constant 0 : index
    %18 = vector.load %arg5[%c0_11, %c0_12] : memref<128x32xf32, #tpu.memory_space<vmem>>, vector<128x32xf32>
    %cst_13 = arith.constant dense<0.000000e+00> : vector<8x32xf32>
    %19 = tpu.matmul %16, %18, %cst_13 {dimension_numbers = #tpu.dot_dimension_numbers<[1], [0], [0], [1], [0, 0, 1, 1], [], []>} : vector<8x128xf32>, vector<128x32xf32>, vector<8x32xf32> -> vector<8x32xf32>
    %20 = arith.addf %17, %19 : vector<8x32xf32>
    %c0_14 = arith.constant 0 : index
    %c0_15 = arith.constant 0 : index
    %21 = vector.load %arg8[%c0_14, %c0_15] : memref<8x32xf32, #tpu.memory_space<vmem>>, vector<8x32xf32>
    tpu.vector_store %arg8[%c0_14, %c0_15], %20 {strides = array<i32>} : memref<8x32xf32, #tpu.memory_space<vmem>>, vector<8x32xf32>,
    %c0_i32_16 = arith.constant 0 : i32
    %22 = arith.cmpi eq, %arg1, %c0_i32_16 : i32
    %23 = arith.extui %22 : i1 to i32
    %c0_i32_17 = arith.constant 0 : i32
    %24 = arith.cmpi ne, %23, %c0_i32_17 : i32
    scf.if %24 {
      %c0_18 = arith.constant 0 : index
      %c0_19 = arith.constant 0 : index
      %25 = vector.load %arg8[%c0_18, %c0_19] : memref<8x32xf32, #tpu.memory_space<vmem>>, vector<8x32xf32>
      %c0_20 = arith.constant 0 : index
      %c0_21 = arith.constant 0 : index
      %26 = vector.load %arg6[%c0_20, %c0_21] : memref<1x32xf32, #tpu.memory_space<vmem>>, vector<1x32xf32>
      %27 = vector.broadcast %26 : vector<1x32xf32> to vector<8x32xf32>
      %28 = arith.addf %25, %27 : vector<8x32xf32>
      %c0_22 = arith.constant 0 : index
      %c0_23 = arith.constant 0 : index
      %29 = vector.load %arg7[%c0_22, %c0_23] : memref<8x32xf32, #tpu.memory_space<vmem>>, vector<8x32xf32>
      tpu.vector_store %arg7[%c0_22, %c0_23], %28 {strides = array<i32>} : memref<8x32xf32, #tpu.memory_space<vmem>>, vector<8x32xf32>,
    } else {
    }
    return
  }
  func.func @transform_0(%arg0: i32, %arg1: i32) -> (i32, i32) {
    %c0_i32 = arith.constant 0 : i32
    %c0_i32_0 = arith.constant 0 : i32
    return %arg0, %c0_i32 : i32, i32
  }
  func.func @transform_1(%arg0: i32, %arg1: i32) -> (i32, i32) {
    %c0_i32 = arith.constant 0 : i32
    %c0_i32_0 = arith.constant 0 : i32
    return %c0_i32, %arg1 : i32, i32
  }
  func.func @transform_2(%arg0: i32, %arg1: i32) -> (i32, i32) {
    %c0_i32 = arith.constant 0 : i32
    %c0_i32_0 = arith.constant 0 : i32
    return %c0_i32, %arg1 : i32, i32
  }
  func.func @transform_3(%arg0: i32, %arg1: i32) -> (i32, i32) {
    %c0_i32 = arith.constant 0 : i32
    %c0_i32_0 = arith.constant 0 : i32
    return %arg1, %c0_i32 : i32, i32
  }
  func.func @transform_4(%arg0: i32, %arg1: i32) -> (i32, i32) {
    %c0_i32 = arith.constant 0 : i32
    %c0_i32_0 = arith.constant 0 : i32
    %c0_i32_1 = arith.constant 0 : i32
    return %c0_i32, %c0_i32_0 : i32, i32
  }
  func.func @transform_5(%arg0: i32, %arg1: i32) -> (i32, i32) {
    %c0_i32 = arith.constant 0 : i32
    %c0_i32_0 = arith.constant 0 : i32
    return %arg0, %c0_i32 : i32, i32
  }
}

</mosaic_0001>

<llo_original>
// kernel: tpu_custom_call.1
$region0: #{tpu_custom_call.1}
  #allocation0 [shape = 'u32[]', space=smem, size = 0x4, offset = 0x4, fixed_abs, tag = 'smem constant byte address 0x4 - core index']
  #allocation1 [shape = 'u32[72,128]{1,0:T(1,128)}', space=vmem, size = 0x9000, scoped, tag = 'internal scratch']
  #allocation2 [shape = 'f32[8,32]{1,0:T(8,128)}', space=vmem, size = 0x1000, scoped, tag = 'scratch operand']
  %s0 = inlined_call_operand.vmem [shape: f32[16,32], index: 0, kind: input, shape index: {}]
  %s1 = inlined_call_operand.vmem [shape: f32[32,128], index: 1, kind: input, shape index: {}]
  %s2 = inlined_call_operand.vmem [shape: f32[1,128], index: 2, kind: input, shape index: {}]
  %s3 = inlined_call_operand.vmem [shape: f32[128,32], index: 3, kind: input, shape index: {}]
  %s4 = inlined_call_operand.vmem [shape: f32[1,32], index: 4, kind: input, shape index: {}]
  %s5 = inlined_call_operand.hbm [shape: f32[16,32], index: 5, kind: output, shape index: {}]
  %s6 = sld [smem:[#allocation0]]
  $region61: #{tpu_custom_call.1} parent=0
    _
  %s8 = ssub.s32 1, %s6
  %s9 = scalar_select 0, %s8, %s6
  $region1: #{tpu_custom_call.1} parent=0
    #allocation3 [shape = 'u8[8192]{0}', space=vmem, size = 0x2000, scoped, tag = 'output window, operand 0']
    #allocation4 [shape = 's32[2]{0}', space=sflag, size = 0x8, scoped, tag = 'scoped memory for tpu_custom_call.1']
    %10 = vsyncpa [#allocation4], 0
    %s11 = scalar_lea.sflag [#allocation4], 1
    %12 = vsyncpa %s11, 0
    loop: start=0, step=1, limit=4
    $region2: #{tpu_custom_call.1} parent=1 // loop_pre_header
      _
    $region3: #{tpu_custom_call.1} parent=1 // loop_header
      %s14 = sphi 0, %s18
      %p15 = scmp.ge.s32.totalorder %s14, 4
      %s21 = sphi 0, %s33
      %s22 = sphi 0, %s29
      %s23 = sphi 0, %s21
      %s24 = sphi 0, %s22
      %s25 = sphi 0, %s23
      %s26 = sphi 0, %s24
      %s36 = sphi 0, %s38
      %s39 = sphi 0, %s36
      %s40 = sphi 0, %s39
      %s56 = sphi 0, %s40
      %s62 = sphi 0, %s64
      %s65 = sphi 0, %s62
      %s66 = sphi 0, %s65
      %s82 = sphi 0, %s66
      %s88 = sphi 0, %s90
      %s91 = sphi 0, %s88
      %s92 = sphi 0, %s91
      %s108 = sphi 0, %s92
      %s114 = sphi 0, %s116
      %s117 = sphi 0, %s114
      %s118 = sphi 0, %s117
      %s134 = sphi 0, %s118
      %s138 = sphi 0, %s138
      %s140 = sphi 0, %s138
      %s141 = sphi 0, %s140
      %s155 = sphi 0, %s141
      %s161 = sphi 0, %s163
      %s164 = sphi 0, %s161
      %s165 = sphi 0, %s164
      %s181 = sphi 0, %s165
    $region4: #{tpu_custom_call.1} parent=1 // loop_header_branch
      %17 = sbr.rel (%p15) target = $region8
    $region5: #{tpu_custom_call.1} parent=1 // loop_body
      %s19 = ssub.s32 %s14, 1
      %s20 = ssub.s32 %s14, 2
      %s27 = sadd.s32 1, %s22
      %p28 = scmp.ge.s32.totalorder %s27, 1
      %s29 = scalar_select %p28, 0, %s27
      %s30 = sadd.s32 1, %s21
      %s31 = scalar_select %p28, %s30, %s21
      %p32 = scmp.ge.s32.totalorder %s31, 2
      %s33 = scalar_select %p32, 0, %s31
      %s34 = ssub.s32 %s21, %s33
      %p35 = scmp.eq.s32.totalorder %s34, 0
      %s37 = sadd.s32 %s36, 1
      %s38 = scalar_select %p35, %s36, %s37
      %p41 = pneg %p35
      %p42 = scmp.eq.s32.totalorder %s14, 1
      %p43 = por %p41, %p42
      %p44 = scmp.ne.s32.totalorder %s36, %s39
      %p45 = scmp.eq.s32.totalorder %s14, 0
      %p46 = por %p44, %p45
      %p47 = scmp.ne.s32.totalorder %s36, %s39
      %p48 = scmp.eq.s32.totalorder %s19, 1
      %p49 = por %p47, %p48
      %p50 = scmp.ne.s32.totalorder %s39, %s40
      %p51 = scmp.eq.s32.totalorder %s19, 0
      %p52 = por %p50, %p51
      %p53 = scmp.ne.s32.totalorder %s39, %s40
      %p54 = scmp.eq.s32.totalorder %s20, 1
      %p55 = por %p53, %p54
      %p57 = scmp.ne.s32.totalorder %s40, %s56
      %p58 = scmp.eq.s32.totalorder %s20, 0
      %p59 = por %p57, %p58
      %s60 = ssub.s32 %s22, %s29
      %p61 = scmp.eq.s32.totalorder %s60, 0
      %s63 = sadd.s32 %s62, 1
      %s64 = scalar_select %p61, %s62, %s63
      %p67 = pneg %p61
      %p68 = scmp.eq.s32.totalorder %s14, 1
      %p69 = por %p67, %p68
      %p70 = scmp.ne.s32.totalorder %s62, %s65
      %p71 = scmp.eq.s32.totalorder %s14, 0
      %p72 = por %p70, %p71
      %p73 = scmp.ne.s32.totalorder %s62, %s65
      %p74 = scmp.eq.s32.totalorder %s19, 1
      %p75 = por %p73, %p74
      %p76 = scmp.ne.s32.totalorder %s65, %s66
      %p77 = scmp.eq.s32.totalorder %s19, 0
      %p78 = por %p76, %p77
      %p79 = scmp.ne.s32.totalorder %s65, %s66
      %p80 = scmp.eq.s32.totalorder %s20, 1
      %p81 = por %p79, %p80
      %p83 = scmp.ne.s32.totalorder %s66, %s82
      %p84 = scmp.eq.s32.totalorder %s20, 0
      %p85 = por %p83, %p84
      %s86 = ssub.s32 %s22, %s29
      %p87 = scmp.eq.s32.totalorder %s86, 0
      %s89 = sadd.s32 %s88, 1
      %s90 = scalar_select %p87, %s88, %s89
      %p93 = pneg %p87
      %p94 = scmp.eq.s32.totalorder %s14, 1
      %p95 = por %p93, %p94
      %p96 = scmp.ne.s32.totalorder %s88, %s91
      %p97 = scmp.eq.s32.totalorder %s14, 0
      %p98 = por %p96, %p97
      %p99 = scmp.ne.s32.totalorder %s88, %s91
      %p100 = scmp.eq.s32.totalorder %s19, 1
      %p101 = por %p99, %p100
      %p102 = scmp.ne.s32.totalorder %s91, %s92
      %p103 = scmp.eq.s32.totalorder %s19, 0
      %p104 = por %p102, %p103
      %p105 = scmp.ne.s32.totalorder %s91, %s92
      %p106 = scmp.eq.s32.totalorder %s20, 1
      %p107 = por %p105, %p106
      %p109 = scmp.ne.s32.totalorder %s92, %s108
      %p110 = scmp.eq.s32.totalorder %s20, 0
      %p111 = por %p109, %p110
      %s112 = ssub.s32 %s22, %s29
      %p113 = scmp.eq.s32.totalorder %s112, 0
      %s115 = sadd.s32 %s114, 1
      %s116 = scalar_select %p113, %s114, %s115
      %p119 = pneg %p113
      %p120 = scmp.eq.s32.totalorder %s14, 1
      %p121 = por %p119, %p120
      %p122 = scmp.ne.s32.totalorder %s114, %s117
      %p123 = scmp.eq.s32.totalorder %s14, 0
      %p124 = por %p122, %p123
      %p125 = scmp.ne.s32.totalorder %s114, %s117
      %p126 = scmp.eq.s32.totalorder %s19, 1
      %p127 = por %p125, %p126
      %p128 = scmp.ne.s32.totalorder %s117, %s118
      %p129 = scmp.eq.s32.totalorder %s19, 0
      %p130 = por %p128, %p129
      %p131 = scmp.ne.s32.totalorder %s117, %s118
      %p132 = scmp.eq.s32.totalorder %s20, 1
      %p133 = por %p131, %p132
      %p135 = scmp.ne.s32.totalorder %s118, %s134
      %p136 = scmp.eq.s32.totalorder %s20, 0
      %p137 = por %p135, %p136
      %s139 = sadd.s32 %s138, 1
      %p142 = scmp.eq.s32.totalorder %s14, 1
      %p143 = scmp.ne.s32.totalorder %s138, %s140
      %p144 = scmp.eq.s32.totalorder %s14, 0
      %p145 = por %p143, %p144
      %p146 = scmp.ne.s32.totalorder %s138, %s140
      %p147 = scmp.eq.s32.totalorder %s19, 1
      %p148 = por %p146, %p147
      %p149 = scmp.ne.s32.totalorder %s140, %s141
      %p150 = scmp.eq.s32.totalorder %s19, 0
      %p151 = por %p149, %p150
      %p152 = scmp.ne.s32.totalorder %s140, %s141
      %p153 = scmp.eq.s32.totalorder %s20, 1
      %p154 = por %p152, %p153
      %p156 = scmp.ne.s32.totalorder %s141, %s155
      %p157 = scmp.eq.s32.totalorder %s20, 0
      %p158 = por %p156, %p157
      %s159 = ssub.s32 %s21, %s33
      %p160 = scmp.eq.s32.totalorder %s159, 0
      %s162 = sadd.s32 %s161, 1
      %s163 = scalar_select %p160, %s161, %s162
      %p166 = pneg %p160
      %p167 = scmp.eq.s32.totalorder %s14, 1
      %p168 = por %p166, %p167
      %p169 = scmp.ne.s32.totalorder %s161, %s164
      %p170 = scmp.eq.s32.totalorder %s14, 0
      %p171 = por %p169, %p170
      %p172 = scmp.ne.s32.totalorder %s161, %s164
      %p173 = scmp.eq.s32.totalorder %s19, 1
      %p174 = por %p172, %p173
      %p175 = scmp.ne.s32.totalorder %s164, %s165
      %p176 = scmp.eq.s32.totalorder %s19, 0
      %p177 = por %p175, %p176
      %p178 = scmp.ne.s32.totalorder %s164, %s165
      %p179 = scmp.eq.s32.totalorder %s20, 1
      %p180 = por %p178, %p179
      %p182 = scmp.ne.s32.totalorder %s165, %s181
      %p183 = scmp.eq.s32.totalorder %s20, 0
      %p184 = por %p182, %p183
      %p185 = scmp.le.s32.totalorder 1, %s14
      %p186 = scmp.lt.s32.totalorder %s14, 3
      %p187 = pnand %p185, %p186
      %p188 = pneg %p187
      // Predicated region
      $region9: #{tpu_custom_call.1} parent=5 // pred_check
        _
      $region10: #{tpu_custom_call.1} parent=5 // pred_check_branch
        %190 = sbr.rel (%p187) target = $region12
      $region11: #{tpu_custom_call.1} parent=5 // pred_region
        %s191 = ssub.s32 %s14, 1
        // Predicated region
        $region13: #{tpu_custom_call.1} parent=11 // pred_check
          %p192 = pneg %p78
        $region14: #{tpu_custom_call.1} parent=11 // pred_check_branch
          %194 = sbr.rel (%p192) target = $region16
        $region15: #{tpu_custom_call.1} parent=11 // pred_region
          %p195 = scmp.lt.s32.totalorder %s24, 0
          %s196 = scalar_select %p195, %s24, 0
          %s197 = smul.addr %s196, 8
          %s198 = scalar_lea.vmem %s1, %s197
        $region16: #{tpu_custom_call.1} parent=11 // pred_fallthru
          _
        // Predicated region
        $region17: #{tpu_custom_call.1} parent=11 // pred_check
          %p199 = pneg %p104
        $region18: #{tpu_custom_call.1} parent=11 // pred_check_branch
          %201 = sbr.rel (%p199) target = $region20
        $region19: #{tpu_custom_call.1} parent=11 // pred_region
          %p202 = scmp.lt.s32.totalorder %s24, 0
          %s203 = scalar_select %p202, %s24, 0
          %s204 = scalar_lea.vmem %s2, %s203
        $region20: #{tpu_custom_call.1} parent=11 // pred_fallthru
          _
        // Predicated region
        $region21: #{tpu_custom_call.1} parent=11 // pred_check
          %p205 = pneg %p130
        $region22: #{tpu_custom_call.1} parent=11 // pred_check_branch
          %207 = sbr.rel (%p205) target = $region24
        $region23: #{tpu_custom_call.1} parent=11 // pred_region
          %s208 = smul.u32 16, %s24
          %p209 = scmp.lt.s32.totalorder %s208, 15
          %s210 = scalar_select %p209, %s208, 15
          %s211 = smul.addr %s210, 8
          %s212 = scalar_lea.vmem %s3, %s211
          %s213 = smul.u32 16, %s24
        $region24: #{tpu_custom_call.1} parent=11 // pred_fallthru
          _
        // Predicated region
        $region25: #{tpu_custom_call.1} parent=11 // pred_check
          %p214 = pneg %p151
        $region26: #{tpu_custom_call.1} parent=11 // pred_check_branch
          %216 = sbr.rel (%p214) target = $region28
        $region27: #{tpu_custom_call.1} parent=11 // pred_region
          _
        $region28: #{tpu_custom_call.1} parent=11 // pred_fallthru
          _
      $region12: #{tpu_custom_call.1} parent=5 // pred_fallthru
        _
      %p217 = scmp.lt.s32.totalorder %s14, 2
      // Predicated region
      $region29: #{tpu_custom_call.1} parent=5 // pred_check
        %p218 = pneg %p217
      $region30: #{tpu_custom_call.1} parent=5 // pred_check_branch
        %220 = sbr.rel (%p218) target = $region32
      $region31: #{tpu_custom_call.1} parent=5 // pred_region
        // Predicated region
        $region33: #{tpu_custom_call.1} parent=31 // pred_check
          %p221 = pneg %p46
        $region34: #{tpu_custom_call.1} parent=31 // pred_check_branch
          %223 = sbr.rel (%p221) target = $region36
        $region35: #{tpu_custom_call.1} parent=31 // pred_region
          %p224 = scmp.lt.s32.totalorder %s21, 1
          %s225 = scalar_select %p224, %s21, 1
          %s226 = smul.addr %s225, 8
          %s227 = scalar_lea.vmem %s0, %s226
        $region36: #{tpu_custom_call.1} parent=31 // pred_fallthru
          _
      $region32: #{tpu_custom_call.1} parent=5 // pred_fallthru
        _
      %p228 = scmp.le.s32.totalorder 1, %s14
      %p229 = scmp.lt.s32.totalorder %s14, 3
      %p230 = pnand %p228, %p229
      %p231 = pneg %p230
      // Predicated region
      $region37: #{tpu_custom_call.1} parent=5 // pred_check
        _
      $region38: #{tpu_custom_call.1} parent=5 // pred_check_branch
        %233 = sbr.rel (%p230) target = $region40
      $region39: #{tpu_custom_call.1} parent=5 // pred_region
        %s234 = ssub.s32 %s14, 1
        %p235 = scmp.lt.s32.totalorder %s23, 1
        %s236 = scalar_select %p235, %s23, 1
        %s237 = smul.addr %s236, 8
        %s238 = scalar_lea.vmem %s0, %s237
        %p239 = pneg %p52
        %p240 = pneg %p49
        %p241 = scmp.lt.s32.totalorder %s24, 0
        %s242 = scalar_select %p241, %s24, 0
        %s243 = smul.addr %s242, 8
        %s244 = scalar_lea.vmem %s1, %s243
        %p245 = pneg %p78
        %p246 = pneg %p75
        %p247 = scmp.lt.s32.totalorder %s24, 0
        %s248 = scalar_select %p247, %s24, 0
        %s249 = scalar_lea.vmem %s2, %s248
        %p250 = pneg %p104
        %p251 = pneg %p101
        %s252 = smul.u32 16, %s24
        %p253 = scmp.lt.s32.totalorder %s252, 15
        %s254 = scalar_select %p253, %s252, 15
        %s255 = smul.addr %s254, 8
        %s256 = scalar_lea.vmem %s3, %s255
        %p257 = pneg %p130
        %p258 = pneg %p127
        %p259 = pneg %p151
        %p260 = pneg %p148
        %p261 = pneg %p177
        %p262 = pneg %p174
        %s263 = sand.u32 %s164, 1
        %s264 = scalar_lea.sflag [#allocation4], %s263
        %s265 = sand.u32 %s164, 1
        %s266 = smul.addr %s265, 8
        %s267 = scalar_lea.vmem [#allocation3], %s266
        %p268 = scmp.lt.s32.totalorder %s23, 1
        %s269 = scalar_select %p268, %s23, 1
        %s270 = smul.addr %s269, 8
        %s271 = scalar_lea.vmem %s0, %s270
        %p272 = scmp.lt.s32.totalorder %s24, 0
        %s273 = scalar_select %p272, %s24, 0
        %s274 = smul.addr %s273, 8
        %s275 = scalar_lea.vmem %s1, %s274
        %p276 = scmp.lt.s32.totalorder %s24, 0
        %s277 = scalar_select %p276, %s24, 0
        %s278 = scalar_lea.vmem %s2, %s277
        %s279 = smul.u32 16, %s24
        %p280 = scmp.lt.s32.totalorder %s279, 15
        %s281 = scalar_select %p280, %s279, 15
        %s282 = smul.addr %s281, 8
        %s283 = scalar_lea.vmem %s3, %s282
        %s284 = smul.u32 16, %s24
        %p285 = scmp.eq.s32.totalorder %s24, 0
        // Predicated region
        $region41: #{tpu_custom_call.1} parent=39 // pred_check
          %p286 = pneg %p285
        $region42: #{tpu_custom_call.1} parent=39 // pred_check_branch
          %288 = sbr.rel (%p286) target = $region44
        $region43: #{tpu_custom_call.1} parent=39 // pred_region
          %vm289 = vcmask 261120
          %290 = vst.msk [vmem:[#allocation2] sm:$0xff] %vm289, 0.0
        $region44: #{tpu_custom_call.1} parent=39 // pred_fallthru
          _
        %v291 = vld [vmem:[%s271] sm:$0xff]
        %v292 = vld [vmem:[%s275] sm:$0xff]
        %v293 = vld [vmem:[%s275 + $0x8] sm:$0xff]
        %v294 = vld [vmem:[%s275 + $0x10] sm:$0xff]
        %v295 = vld [vmem:[%s275 + $0x18] sm:$0xff]
        %v296 = vld [vmem:[%s278] sm:$0x1]
        %v298 = vperm.slane %v296, 0
        %vm300 = vcmask 261120
        %v302 = vsel %vm300, %v291, 0
        %304 = vmatpush.msra.mxu0 0.0
        %305 = vmatpush.msra.mxu0 0.0
        %306 = vmatpush.msra.mxu0 0.0
        %307 = vmatpush.msra.mxu0 0.0
        %308 = vmatpush.msra.mxu0 0.0
        %309 = vmatpush.msra.mxu0 0.0
        %310 = vmatpush.msra.mxu0 0.0
        %311 = vmatpush.msra.mxu0 0.0
        %312 = vmatpush.msra.mxu0 0.0
        %313 = vmatpush.msra.mxu0 0.0
        %314 = vmatpush.msra.mxu0 0.0
        %315 = vmatpush.msra.mxu0 0.0
        %316 = vmatpush.msra.mxu0 %v295
        %317 = vmatpush.msra.mxu0 %v294
        %318 = vmatpush.msra.mxu0 %v293
        %319 = vmatpush.msra.mxu0 %v292
        %320 = vmatmul.f32.gmra.mxu0 %v302
        %v321 = vpop.f32.mrf.mxu0
        %v322 = vadd.f32 %v298, %v321
        %323 = vdwg.mxu0
        %v324 = vsub.f32 0.0, %v322
        %v325 = vmul.f32 %v324, 1.442695
        %v326 = vpow.pop %v325
        %v327 = vadd.f32 %v326, 1.0
        %v328 = vrcp.pop %v327
        %v329 = vmul.f32 %v327, %v328
        %v330 = vsub.f32 1.0, %v329
        %v331 = vmul.f32 %v328, %v330
        %v332 = vadd.f32 %v328, %v331
        %vm333 = vweird.f32 %v327
        %vm334 = vweird.f32 %v328
        %vm335 = vmor %vm333, %vm334
        %v336 = vsel %vm335, %v328, %v332
        %v337 = vand.u32 2147483647, %v327
        %vm338 = vcmp.eq.f32.partialorder %v337, 8.507059e+37
        %v339 = vand.u32 %v327, 2147483648
        %v340 = vor.u32 1.1754944e-38, %v339
        %v341 = vsel %vm338, %v340, %v336
        %v342 = vmul.f32 1.0, %v341
        %v343 = vmul.f32 %v322, %v342
        %v344 = vld [vmem:[#allocation2] sm:$0xff]
        %v345 = vld [vmem:[%s283] sm:$0xff]
        %v346 = vld [vmem:[%s283 + $0x8] sm:$0xff]
        %v347 = vld [vmem:[%s283 + $0x10] sm:$0xff]
        %v348 = vld [vmem:[%s283 + $0x18] sm:$0xff]
        %v349 = vld [vmem:[%s283 + $0x20] sm:$0xff]
        %v350 = vld [vmem:[%s283 + $0x28] sm:$0xff]
        %v351 = vld [vmem:[%s283 + $0x30] sm:$0xff]
        %v352 = vld [vmem:[%s283 + $0x38] sm:$0xff]
        %v353 = vld [vmem:[%s283 + $0x40] sm:$0xff]
        %v354 = vld [vmem:[%s283 + $0x48] sm:$0xff]
        %v355 = vld [vmem:[%s283 + $0x50] sm:$0xff]
        %v356 = vld [vmem:[%s283 + $0x58] sm:$0xff]
        %v357 = vld [vmem:[%s283 + $0x60] sm:$0xff]
        %v358 = vld [vmem:[%s283 + $0x68] sm:$0xff]
        %v359 = vld [vmem:[%s283 + $0x70] sm:$0xff]
        %v360 = vld [vmem:[%s283 + $0x78] sm:$0xff]
        %361 = vmatpush.msra.mxu0 %v360
        %362 = vmatpush.msra.mxu0 %v359
        %363 = vmatpush.msra.mxu0 %v358
        %364 = vmatpush.msra.mxu0 %v357
        %365 = vmatpush.msra.mxu0 %v356
        %366 = vmatpush.msra.mxu0 %v355
        %367 = vmatpush.msra.mxu0 %v354
        %368 = vmatpush.msra.mxu0 %v353
        %369 = vmatpush.msra.mxu0 %v352
        %370 = vmatpush.msra.mxu0 %v351
        %371 = vmatpush.msra.mxu0 %v350
        %372 = vmatpush.msra.mxu0 %v349
        %373 = vmatpush.msra.mxu0 %v348
        %374 = vmatpush.msra.mxu0 %v347
        %375 = vmatpush.msra.mxu0 %v346
        %376 = vmatpush.msra.mxu0 %v345
        %377 = vmatmul.f32.gmra.mxu0 %v343
        %v378 = vpop.f32.mrf.mxu0
        %v379 = vadd.f32 0.0, %v378
        %380 = vdwg.mxu0
        %v381 = vadd.f32 %v344, %v379
        %382 = vst.msk [vmem:[#allocation2] sm:$0xff] %vm300, %v381
        // Predicated region
        $region45: #{tpu_custom_call.1} parent=39 // pred_check
          %p383 = pneg %p285
        $region46: #{tpu_custom_call.1} parent=39 // pred_check_branch
          %385 = sbr.rel (%p383) target = $region48
        $region47: #{tpu_custom_call.1} parent=39 // pred_region
          %v386 = vld [vmem:[#allocation2] sm:$0xff]
          %v387 = vld [vmem:[%s4] sm:$0x1]
          %v389 = vperm.slane %v387, 0
          %v391 = vadd.f32 %v386, %v389
          %392 = vst.msk [vmem:[%s267] sm:$0xff] %vm300, %v391
        $region48: #{tpu_custom_call.1} parent=39 // pred_fallthru
          _
        %s393 = sand.u32 %s164, 1
        %s394 = scalar_lea.sflag [#allocation4], %s393
        %s395 = sand.u32 %s164, 1
        %s396 = smul.addr %s395, 8
        %s397 = scalar_lea.vmem [#allocation3], %s396
        // Predicated region
        $region49: #{tpu_custom_call.1} parent=39 // pred_check
          %p398 = pneg %p174
        $region50: #{tpu_custom_call.1} parent=39 // pred_check_branch
          %400 = sbr.rel (%p398) target = $region52
        $region51: #{tpu_custom_call.1} parent=39 // pred_region
          %402 = vsyncadd %s394, 0
          %s403 = smul.addr %s23, 8
          %s404 = scalar_lea.hbm %s5, %s403
          %s406 = sshll.u32 %s397, 4
          %s407 = int_to_ptr.vmem [resolvable:$true] %s406
          %s408 = sshll.u32 %s404, 4
          %s409 = int_to_ptr.hbm [resolvable:$true] %s408
          %411 = dma.vmem_to_hbm [thread:$0]  %s407, 128, %s409, %s394
        $region52: #{tpu_custom_call.1} parent=39 // pred_fallthru
          _
      $region40: #{tpu_custom_call.1} parent=5 // pred_fallthru
        _
      %p412 = scmp.le.s32.totalorder 2, %s14
      // Predicated region
      $region53: #{tpu_custom_call.1} parent=5 // pred_check
        %p413 = pneg %p412
      $region54: #{tpu_custom_call.1} parent=5 // pred_check_branch
        %415 = sbr.rel (%p413) target = $region56
      $region55: #{tpu_custom_call.1} parent=5 // pred_region
        %s416 = ssub.s32 %s14, 2
        // Predicated region
        $region57: #{tpu_custom_call.1} parent=55 // pred_check
          %p417 = pneg %p180
        $region58: #{tpu_custom_call.1} parent=55 // pred_check_branch
          %419 = sbr.rel (%p417) target = $region60
        $region59: #{tpu_custom_call.1} parent=55 // pred_region
          %s420 = sand.u32 %s165, 1
          %s421 = scalar_lea.sflag [#allocation4], %s420
          %s422 = sand.u32 %s165, 1
          %s423 = smul.addr %s422, 8
          %s424 = scalar_lea.vmem [#allocation3], %s423
          %426 = dma.done %s421, 128
        $region60: #{tpu_custom_call.1} parent=55 // pred_fallthru
          _
      $region56: #{tpu_custom_call.1} parent=5 // pred_fallthru
        _
    $region6: #{tpu_custom_call.1} parent=1 // loop_footer
      %s18 = sadd.s32 1, %s14
    $region7: #{tpu_custom_call.1} parent=1 // loop_footer_branch
      %13 = sbr.rel target = $region3
    $region8: #{tpu_custom_call.1} parent=1 // loop_exit
      _
    %427 = vsyncpa [#allocation4], 1
    %s428 = scalar_lea.sflag [#allocation4], 1
    %429 = vsyncpa %s428, 1

</llo_original>
